<compile_context>
chip_gen: v6e
topology: v6e:2x2x1
jax: 0.10.0
libtpu: 0.0.40
codegen_flags: <defaults>
</compile_context>

<pallas_src>
import functools

import jax
import jax.numpy as jnp
from jax.experimental import pallas as pl
from jax.experimental.pallas import tpu as pltpu

_PAIRWISE_EPS = 1e-6  # matches torch.nn.functional.pairwise_distance default eps


def _round_up(x, m):
    return (x + m - 1) // m * m


def _contrastive_loss_kernel(x1_ref, x2_ref, label_ref, out_ref, *,
                             true_b, tile_b, margin):
    i = pl.program_id(0)

    x1 = x1_ref[...].astype(jnp.float32)          # (TB, D)
    x2 = x2_ref[...].astype(jnp.float32)          # (TB, D)
    label = label_ref[...].astype(jnp.float32)    # (TB, 1)

    # F.pairwise_distance: ||x1 - x2 + eps||_2 along the last dim.
    diff = x1 - x2 + _PAIRWISE_EPS
    dist_sq = jnp.sum(diff * diff, axis=-1, keepdims=True)   # (TB, 1)  XLU reduce
    dist = jnp.sqrt(dist_sq)                                  # (TB, 1)  EUP

    # (1 - y) * d^2 + y * clamp(margin - d, 0)^2 ; reuse dist_sq directly.
    hinge = jnp.maximum(margin - dist, 0.0)
    per_sample = (1.0 - label) * dist_sq + label * (hinge * hinge)  # (TB, 1)

    # Mask rows that belong to batch padding (only hit on the padded fallback).
    row = jax.lax.broadcasted_iota(jnp.int32, (tile_b, 1), 0) + i * tile_b
    per_sample = jnp.where(row < true_b, per_sample, 0.0)

    partial = jnp.sum(per_sample)  # scalar partial sum for this tile
    # Lane-dense full-tile store (unmasked vst); wrapper reads [tile, 0, 0].
    out_ref[...] = jnp.broadcast_to(partial, (1, 8, 128)).astype(jnp.float32)


def _pick_tiling(B, D, itemsize, block_rows):
    """Choose (tile_rows, padded_B, num_tiles), avoiding padding when possible."""
    per_row_bytes = 2 * D * itemsize + 4          # x1 row + x2 row + label
    budget_bytes = 8 << 20                        # per buffer-set working budget
    cap = max(8, min(block_rows, budget_bytes // max(per_row_bytes, 1)) // 8 * 8)

    # Small batch: one full-array tile (no (8,·) constraint issue, no padding).
    if B <= cap:
        return B, B, 1

    # Large batch: prefer a multiple-of-8 divisor of B -> no padding copy.
    t = cap
    while t >= 8:
        if B % t == 0:
            break
        t -= 8
    else:
        t = 0
    if t > 0 and 4 * t >= cap:   # divisor found and tiles not degenerately small
        return t, B, B // t

    # Fallback: pad to a multiple of the capped tile size (rows masked in-kernel).
    tb = cap
    b_pad = _round_up(B, tb)
    return tb, b_pad, b_pad // tb


def contrastive_loss(output1, output2, label, *, margin=2.0, block_rows=1024):
    B, D = output1.shape
    itemsize = jnp.dtype(output1.dtype).itemsize

    tb, b_pad, num_tiles = _pick_tiling(B, D, itemsize, block_rows)
    # TODO(synk): very large D (single 8-row tile over VMEM budget) would need
    # an additional feature-dim tiling pass; not needed for embedding-sized D.

    if b_pad != B:
        pad = b_pad - B
        output1 = jnp.pad(output1, ((0, pad), (0, 0)))
        output2 = jnp.pad(output2, ((0, pad), (0, 0)))
        label = jnp.pad(label, ((0, pad),))
    label2d = label.reshape(b_pad, 1).astype(jnp.float32)

    # Double-buffered footprint: 2 bufs x (2 input tiles + label tile + out tile).
    tile_bytes = 2 * (2 * tb * D * itemsize + tb * 4 + 8 * 128 * 4)
    vmem_limit = int(min(max(4 * tile_bytes, 4 << 20), 48 << 20))

    kernel = functools.partial(
        _contrastive_loss_kernel, true_b=B, tile_b=tb, margin=float(margin))

    partials = pl.pallas_call(
        kernel,
        out_shape=jax.ShapeDtypeStruct((num_tiles, 8, 128), jnp.float32),
        grid_spec=pltpu.PrefetchScalarGridSpec(
            num_scalar_prefetch=0,
            grid=(num_tiles,),
            in_specs=[
                pl.BlockSpec((tb, D), lambda i: (i, 0)),
                pl.BlockSpec((tb, D), lambda i: (i, 0)),
                pl.BlockSpec((tb, 1), lambda i: (i, 0)),
            ],
            out_specs=pl.BlockSpec((1, 8, 128), lambda i: (i, 0, 0)),
        ),
        compiler_params=pltpu.CompilerParams(
            dimension_semantics=("parallel",),
            vmem_limit_bytes=vmem_limit,
        ),
    )(output1, output2, label2d)

    # Final mean over the true batch size (padded rows were masked to 0).
    return jnp.sum(partials[:, 0, 0]) / B


def _reference_loss(output1, output2, label, margin=2.0):
    # Pure-JAX reference mirroring the PyTorch module.
    diff = output1.astype(jnp.float32) - output2.astype(jnp.float32) + _PAIRWISE_EPS
    dist = jnp.sqrt(jnp.sum(diff * diff, axis=-1))
    hinge = jnp.maximum(margin - dist, 0.0)
    return jnp.mean((1.0 - label) * dist**2 + label * hinge**2)


if __name__ == "__main__":
    key = jax.random.PRNGKey(0)

    # Test 1: small demo shape -> single full-array tile, no padding.
    k1, k2, k3 = jax.random.split(key, 3)
    B, D = 8, 32
    output1 = jax.random.normal(k1, (B, D), dtype=jnp.float32)
    output2 = jax.random.normal(k2, (B, D), dtype=jnp.float32)
    label = jax.random.bernoulli(k3, p=0.5, shape=(B,)).astype(jnp.float32)

    loss = jax.block_until_ready(contrastive_loss(output1, output2, label))
    ref = _reference_loss(output1, output2, label)
    assert jnp.allclose(loss, ref, rtol=1e-5, atol=1e-5), (loss, ref)

    # Test 2: batch not a multiple of the tile -> exercises padded multi-tile
    # fallback, per-tile partials and padded-row masking.
    k4, k5, k6 = jax.random.split(jax.random.PRNGKey(1), 3)
    B2, D2 = 70, 32
    o1 = jax.random.normal(k4, (B2, D2), dtype=jnp.float32)
    o2 = jax.random.normal(k5, (B2, D2), dtype=jnp.float32)
    lab = jax.random.bernoulli(k6, p=0.5, shape=(B2,)).astype(jnp.float32)

    loss2 = jax.block_until_ready(contrastive_loss(o1, o2, lab, block_rows=16))
    ref2 = _reference_loss(o1, o2, lab)
    assert jnp.allclose(loss2, ref2, rtol=1e-5, atol=1e-5), (loss2, ref2)

    # Test 3: batch divisible by the tile -> multi-tile path with NO padding copy.
    k7, k8, k9 = jax.random.split(jax.random.PRNGKey(2), 3)
    B3, D3 = 64, 32
    p1 = jax.random.normal(k7, (B3, D3), dtype=jnp.float32)
    p2 = jax.random.normal(k8, (B3, D3), dtype=jnp.float32)
    lab3 = jax.random.bernoulli(k9, p=0.5, shape=(B3,)).astype(jnp.float32)

    loss3 = jax.block_until_ready(contrastive_loss(p1, p2, lab3, block_rows=16))
    ref3 = _reference_loss(p1, p2, lab3)
    assert jnp.allclose(loss3, ref3, rtol=1e-5, atol=1e-5), (loss3, ref3)

    print("KERNEL_OK")
</pallas_src>

<mosaic_0001>
module attributes {stable_mosaic.version = 11 : i64} {
  func.func @_contrastive_loss_kernel(%arg0: i32, %arg1: memref<8x32xf32, #tpu.memory_space<vmem>>, %arg2: memref<8x32xf32, #tpu.memory_space<vmem>>, %arg3: memref<8x1xf32, #tpu.memory_space<vmem>>, %arg4: memref<1x8x128xf32, #tpu.memory_space<vmem>>) attributes {dimension_semantics = [#tpu.dimension_semantics<parallel>], iteration_bounds = array<i64: 1>, scalar_prefetch = 0 : i64, scratch_operands = 0 : i64, tpu.core_type = #tpu.core_type<tc>, window_params = [{transform_indices = @transform_0, window_bounds = array<i64: 8, 32>}, {transform_indices = @transform_1, window_bounds = array<i64: 8, 32>}, {transform_indices = @transform_2, window_bounds = array<i64: 8, 1>}, {transform_indices = @transform_3, window_bounds = array<i64: 1, 8, 128>}]} {
    %c0 = arith.constant 0 : index
    %c0_0 = arith.constant 0 : index
    %0 = vector.load %arg1[%c0, %c0_0] : memref<8x32xf32, #tpu.memory_space<vmem>>, vector<8x32xf32>
    %c0_1 = arith.constant 0 : index
    %c0_2 = arith.constant 0 : index
    %1 = vector.load %arg2[%c0_1, %c0_2] : memref<8x32xf32, #tpu.memory_space<vmem>>, vector<8x32xf32>
    %c0_3 = arith.constant 0 : index
    %c0_4 = arith.constant 0 : index
    %2 = vector.load %arg3[%c0_3, %c0_4] : memref<8x1xf32, #tpu.memory_space<vmem>>, vector<8x1xf32>
    %3 = arith.subf %0, %1 : vector<8x32xf32>
    %cst = arith.constant 9.99999997E-7 : f32
    %4 = vector.broadcast %cst : f32 to vector<8x32xf32>
    %5 = arith.addf %3, %4 : vector<8x32xf32>
    %6 = arith.mulf %5, %5 : vector<8x32xf32>
    %cst_5 = arith.constant dense<0.000000e+00> : vector<8xf32>
    %7 = vector.multi_reduction <add>, %6, %cst_5 [1] : vector<8x32xf32> to vector<8xf32>
    %8 = vector.shape_cast %7 : vector<8xf32> to vector<8x1xf32>
    %9 = math.sqrt %8 : vector<8x1xf32>
    %cst_6 = arith.constant 2.000000e+00 : f32
    %10 = vector.broadcast %cst_6 : f32 to vector<8x1xf32>
    %11 = arith.subf %10, %9 : vector<8x1xf32>
    %cst_7 = arith.constant 0.000000e+00 : f32
    %12 = vector.broadcast %cst_7 : f32 to vector<8x1xf32>
    %13 = arith.maximumf %11, %12 : vector<8x1xf32>
    %cst_8 = arith.constant 1.000000e+00 : f32
    %14 = vector.broadcast %cst_8 : f32 to vector<8x1xf32>
    %15 = arith.subf %14, %2 : vector<8x1xf32>
    %16 = arith.mulf %15, %8 : vector<8x1xf32>
    %17 = arith.mulf %13, %13 : vector<8x1xf32>
    %18 = arith.mulf %2, %17 : vector<8x1xf32>
    %19 = arith.addf %16, %18 : vector<8x1xf32>
    %20 = tpu.iota {dimensions = array<i32: 0>} : vector<8x1xi32>
    %c8_i32 = arith.constant 8 : i32
    %21 = arith.muli %arg0, %c8_i32 : i32
    %22 = vector.broadcast %21 : i32 to vector<8x1xi32>
    %23 = arith.addi %20, %22 : vector<8x1xi32>
    %c8_i32_9 = arith.constant 8 : i32
    %24 = vector.broadcast %c8_i32_9 : i32 to vector<8x1xi32>
    %25 = arith.cmpi slt, %23, %24 : vector<8x1xi32>
    %cst_10 = arith.constant 0.000000e+00 : f32
    %26 = vector.broadcast %cst_10 : f32 to vector<8x1xf32>
    %27 = arith.select %25, %19, %26 : vector<8x1xi1>, vector<8x1xf32>
    %28 = vector.shape_cast %27 : vector<8x1xf32> to vector<1x8x1xf32>
    %cst_11 = arith.constant dense<0.000000e+00> : vector<1xf32>
    %29 = vector.multi_reduction <add>, %28, %cst_11 [1, 2] : vector<1x8x1xf32> to vector<1xf32>
    %30 = vector.shape_cast %29 : vector<1xf32> to vector<1x1x1xf32>
    %31 = vector.extract %30[0, 0, 0] : f32 from vector<1x1x1xf32>
    %32 = vector.broadcast %31 : f32 to vector<1x8x128xf32>
    %c0_12 = arith.constant 0 : index
    %c0_13 = arith.constant 0 : index
    %c0_14 = arith.constant 0 : index
    %33 = vector.load %arg4[%c0_12, %c0_13, %c0_14] : memref<1x8x128xf32, #tpu.memory_space<vmem>>, vector<1x8x128xf32>
    tpu.vector_store %arg4[%c0_12, %c0_13, %c0_14], %32 {strides = array<i32>} : memref<1x8x128xf32, #tpu.memory_space<vmem>>, vector<1x8x128xf32>,
    return
  }
  func.func @transform_0(%arg0: i32) -> (i32, i32) {
    %c0_i32 = arith.constant 0 : i32
    %c0_i32_0 = arith.constant 0 : i32
    return %arg0, %c0_i32 : i32, i32
  }
  func.func @transform_1(%arg0: i32) -> (i32, i32) {
    %c0_i32 = arith.constant 0 : i32
    %c0_i32_0 = arith.constant 0 : i32
    return %arg0, %c0_i32 : i32, i32
  }
  func.func @transform_2(%arg0: i32) -> (i32, i32) {
    %c0_i32 = arith.constant 0 : i32
    %c0_i32_0 = arith.constant 0 : i32
    return %arg0, %c0_i32 : i32, i32
  }
  func.func @transform_3(%arg0: i32) -> (i32, i32, i32) {
    %c0_i32 = arith.constant 0 : i32
    %c0_i32_0 = arith.constant 0 : i32
    %c0_i32_1 = arith.constant 0 : i32
    return %arg0, %c0_i32, %c0_i32_0 : i32, i32, i32
  }
}

</mosaic_0001>

<llo_original>
// kernel: tpu_custom_call.1
$region0: #{tpu_custom_call.1}
  #allocation0 [shape = 'u32[]', space=smem, size = 0x4, offset = 0x4, fixed_abs, tag = 'smem constant byte address 0x4 - core index']
  #allocation1 [shape = 'u32[144,128]{1,0:T(1,128)}', space=vmem, size = 0x12000, scoped, tag = 'internal scratch']
  %s0 = inlined_call_operand.vmem [shape: f32[8,32], index: 0, kind: input, shape index: {}]
  %s1 = inlined_call_operand.hbm [shape: f32[8,32], index: 1, kind: input, shape index: {}]
  %s2 = inlined_call_operand.vmem [shape: f32[8,1], index: 2, kind: input, shape index: {}]
  %s3 = inlined_call_operand.hbm [shape: f32[1,8,128], index: 3, kind: output, shape index: {}]
  %s4 = sld [smem:[#allocation0]]
  $region26: #{tpu_custom_call.1} parent=0
    _
  %s6 = ssub.s32 1, %s4
  %s7 = scalar_select 0, %s6, %s4
  $region1: #{tpu_custom_call.1} parent=0
    #allocation2 [shape = 'u8[4096]{0}', space=vmem, size = 0x1000, scoped, tag = 'input window, operand 1, single buffered']
    #allocation3 [shape = 's32[1]{0}', space=sflag, size = 0x4, scoped, tag = 'scoped memory for tpu_custom_call.1']
    #allocation4 [shape = 's32[1]{0}', space=sflag, size = 0x4, scoped, tag = 'scoped memory for tpu_custom_call.1']
    #allocation5 [shape = 'u8[4096]{0}', space=vmem, size = 0x1000, scoped, tag = 'output window, operand 0, single buffered']
    %8 = vsyncpa [#allocation3], 0
    %9 = vsyncpa [#allocation4], 0
    // Predicated region
    $region2: #{tpu_custom_call.1} parent=1 // pred_check
      _
    $region3: #{tpu_custom_call.1} parent=1 // pred_check_branch
      %11 = sbr.rel (0) target = $region5
    $region4: #{tpu_custom_call.1} parent=1 // pred_region
      _
    $region5: #{tpu_custom_call.1} parent=1 // pred_fallthru
      _
    // Predicated region
    $region6: #{tpu_custom_call.1} parent=1 // pred_check
      _
    $region7: #{tpu_custom_call.1} parent=1 // pred_check_branch
      %13 = sbr.rel (0) target = $region9
    $region8: #{tpu_custom_call.1} parent=1 // pred_region
      %s15 = ssub.s32 128, 128
      %16 = vsyncadd [#allocation3], %s15
      %s18 = sshll.u32 [#allocation2], 4
      %s19 = int_to_ptr.vmem [resolvable:$true] %s18
      %21 = dma.hbm_to_vmem [thread:$0]  %s1, 128, %s19, [#allocation3]
    $region9: #{tpu_custom_call.1} parent=1 // pred_fallthru
      _
    // Predicated region
    $region10: #{tpu_custom_call.1} parent=1 // pred_check
      _
    $region11: #{tpu_custom_call.1} parent=1 // pred_check_branch
      %23 = sbr.rel (0) target = $region13
    $region12: #{tpu_custom_call.1} parent=1 // pred_region
      _
    $region13: #{tpu_custom_call.1} parent=1 // pred_fallthru
      _
    // Predicated region
    $region14: #{tpu_custom_call.1} parent=1 // pred_check
      _
    $region15: #{tpu_custom_call.1} parent=1 // pred_check_branch
      %25 = sbr.rel (0) target = $region17
    $region16: #{tpu_custom_call.1} parent=1 // pred_region
      %26 = dma.done [#allocation3], 128
    $region17: #{tpu_custom_call.1} parent=1 // pred_fallthru
      _
    %v27 = vld [vmem:[%s0] sm:$0xff]
    %v28 = vld [vmem:[#allocation2] sm:$0xff]
    %v29 = vld [vmem:[%s2] sm:$0xff]
    %v30 = vsub.f32 %v27, %v28
    %v31 = vadd.f32 %v30, 1e-06
    %v32 = vmul.f32 %v31, %v31
    %vm33 = vcmask 261120
    %v34 = vsel %vm33, %v32, 0.0
    %35 = vadd.xlane.f32.xlu0 %v34
    %v36 = vpop.xlane.xlu0 %35
    %v37 = vrsqrt.pop %v36
    %v38 = vmul.f32 %v36, %v37
    %vm39 = vcmp.eq.f32.partialorder %v36, inf
    %v40 = vsel %vm39, %v36, %v38
    %vm41 = vcmp.eq.f32.partialorder %v36, 0.0
    %v42 = vand.u32 %v36, 2147483648
    %v43 = vsel %vm41, %v42, %v40
    %v44 = vsub.f32 2.0, %v43
    %v45 = vmax.f32 %v44, 0.0
    %v46 = vsub.f32 1.0, %v29
    %v47 = vmul.f32 %v46, %v36
    %v48 = vmul.f32 %v45, %v45
    %v49 = vmul.f32 %v29, %v48
    %v50 = vadd.f32 %v47, %v49
    %v51 = vlaneseq
    %v52 = vshrl.u32 %v51, 7
    %s53 = smul.u32 0, 8
    %v54 = vstv %s53
    %v55 = vadd.s32 %v52, %v54
    %vm56 = vcmp.lt.s32.totalorder %v55, 8
    %v57 = vsel %vm56, %v50, 0.0
    %vm58 = vcmask 7168
    %v59 = vsel %vm58, %v57, 0.0
    %60 = vadd.xlane.f32.xlu0 %v59
    %v61 = vpop.xlane.xlu0 %60
    %v62 = vrot.slane %v61, 4
    %v63 = vadd.f32 %v61, %v62
    %v64 = vrot.slane %v63, 2
    %v65 = vadd.f32 %v63, %v64
    %v66 = vrot.slane %v65, 1
    %v67 = vadd.f32 %v65, %v66
    %s68 = vtos %v67
    %v69 = vstv %s68
    %70 = vst [vmem:[#allocation5] sm:$0xff] %v69
    // Predicated region
    $region18: #{tpu_custom_call.1} parent=1 // pred_check
      _
    $region19: #{tpu_custom_call.1} parent=1 // pred_check_branch
      %72 = sbr.rel (0) target = $region21
    $region20: #{tpu_custom_call.1} parent=1 // pred_region
      %s74 = ssub.s32 128, 128
      %75 = vsyncadd [#allocation4], %s74
      %s77 = sshll.u32 [#allocation5], 4
      %s78 = int_to_ptr.vmem [resolvable:$true] %s77
      %80 = dma.vmem_to_hbm [thread:$0]  %s78, 128, %s3, [#allocation4]
    $region21: #{tpu_custom_call.1} parent=1 // pred_fallthru
      _
    // Predicated region
    $region22: #{tpu_custom_call.1} parent=1 // pred_check
      _
    $region23: #{tpu_custom_call.1} parent=1 // pred_check_branch
      %82 = sbr.rel (0) target = $region25
    $region24: #{tpu_custom_call.1} parent=1 // pred_region
      %83 = dma.done [#allocation4], 128
    $region25: #{tpu_custom_call.1} parent=1 // pred_fallthru
      _
    %84 = vsyncpa [#allocation3], 1
    %85 = vsyncpa [#allocation4], 1

</llo_original>
